<compile_context>
chip_gen: v6e
topology: v6e:2x2x1
jax: 0.10.0
libtpu: 0.0.40
codegen_flags: <defaults>
</compile_context>

<pallas_src>
import math

import jax
import jax.numpy as jnp
from jax.experimental import pallas as pl
from jax.experimental.pallas import tpu as pltpu


def cross_attention_kernel(f1_ref, f2_ref,
                           wk_ref, wv_ref,
                           wf_ref, bf_ref, w2_ref, b2_ref,
                           out_ref):
    f1 = f1_ref[...]                      # (TB, E)
    f2 = f2_ref[...]                      # (TB, E)
    tb = f1.shape[0]

    d = f1 - f2                           # (TB, E)

    # Per-head attention weight on feature1.  wk_full already contains the
    # query projection, the 1/sqrt(Dh) scale, the per-head reduction and the
    # lane expansion, so s[:, e] == s1_head(e) - s2_head(e).  softmax over a
    # length-2 key axis == sigmoid of the score difference.
    s = jnp.dot(d, wk_ref[...], preferred_element_type=jnp.float32)       # (TB, E)
    w = 1.0 / (1.0 + jnp.exp(-s))                                         # (TB, E)

    # Fused V projection of [d ; f2] — one MXU push instead of four.
    x = jnp.concatenate([d, f2], axis=0)                                  # (2TB, E)
    vv = jnp.dot(x, wv_ref[...], preferred_element_type=jnp.float32)      # (2TB, E)
    vd = vv[:tb, :]                       # (v1 - v2) without bias (bias cancels)
    v2 = vv[tb:, :]                       # f2 @ Wv^T (bias folded into bf)
    attn = v2 + w * vd                    # (TB, E)

    # Fused out_proj -> fc1 -> ReLU.
    h1 = jnp.maximum(
        jnp.dot(attn, wf_ref[...], preferred_element_type=jnp.float32) + bf_ref[...],
        0.0)                              # (TB, hidden)

    # fc2 (hidden -> 1) on the VPU: elementwise mul + lane reduction.
    # TODO(synk): for very large B, emit a lane-dense (1, tb) transposed output
    # instead of this masked single-lane column store.
    out_ref[...] = jnp.sum(h1 * w2_ref[...], axis=-1, keepdims=True) + b2_ref[...]


def _prepare_fused_params(p, E, H):
    """Host-side algebraic fusion of the per-call-invariant parameters."""
    Dh = E // H
    scale = 1.0 / math.sqrt(Dh)
    # q projection + scale (batch independent).
    q_scaled = (p["query"] @ p["wq_t"] + p["bq"]) * scale                 # (1, E)
    # Fold q, scale, per-head segment sum and head->lane expansion into Wk.
    wk_head = (p["wk_t"] * q_scaled).reshape(E, H, Dh).sum(axis=2)        # (E, H)
    wk_full = jnp.repeat(wk_head, Dh, axis=1)                             # (E, E)
    # Fuse out_proj into fc1 (no nonlinearity between them); fold bv too.
    w_fused = p["wo_t"] @ p["w1_t"]                                       # (E, hidden)
    b_fused = (p["bv"] @ p["wo_t"] + p["bo"]) @ p["w1_t"] + p["b1"]       # (1, hidden)
    w2_row = p["w2_t"].T                                                  # (1, hidden)
    return wk_full, p["wv_t"], w_fused, b_fused, w2_row, p["b2"]


def cross_attention_model(f1, f2, params, *, num_heads, tb=None):
    B, E = f1.shape
    hidden = params["w1_t"].shape[1]
    if tb is None:
        # Large batch tile: amortizes per-step overhead and fills the MXU M dim.
        # (On v7x with large B, pick tb = B // (2*k) so the grid has >= 2
        #  parallel steps for the two TensorCores.)
        tb = min(B, 512)
    assert B % tb == 0 and tb % 8 == 0

    wk_full, wv_t, w_fused, b_fused, w2_row, b2 = _prepare_fused_params(
        params, E, num_heads)

    feat_spec = pl.BlockSpec((tb, E), lambda i: (i, 0))

    def rep(shape):
        # replicated (parameter) block: constant block index -> fetched once
        return pl.BlockSpec(shape, lambda i: (0, 0))

    return pl.pallas_call(
        cross_attention_kernel,
        out_shape=jax.ShapeDtypeStruct((B, 1), jnp.float32),
        grid=(B // tb,),
        in_specs=[
            feat_spec, feat_spec,            # feature1, feature2
            rep((E, E)),                     # wk_full (q/scale/head-sum folded in)
            rep((E, E)),                     # Wv^T
            rep((E, hidden)), rep((1, hidden)),   # fused Wo.W1, fused bias
            rep((1, hidden)), rep((1, 1)),        # w2 row, b2
        ],
        out_specs=pl.BlockSpec((tb, 1), lambda i: (i, 0)),
        compiler_params=pltpu.CompilerParams(dimension_semantics=("parallel",)),
    )(f1, f2, wk_full, wv_t, w_fused, b_fused, w2_row, b2)


def init_params(key, E, hidden):
    # Deterministic synthetic init (same tensor shapes as the nn.Module).
    ks = jax.random.split(key, 9)
    s = 0.1
    query = jax.random.normal(ks[0], (1, E), jnp.float32)             # nn.Parameter(1, query_dim)
    in_proj_w = jax.random.normal(ks[1], (3 * E, E), jnp.float32) * s # MHA in_proj_weight
    in_proj_b = jax.random.normal(ks[2], (3 * E,), jnp.float32) * s   # MHA in_proj_bias
    wo = jax.random.normal(ks[3], (E, E), jnp.float32) * s            # MHA out_proj.weight
    bo = jax.random.normal(ks[4], (E,), jnp.float32) * s
    w1 = jax.random.normal(ks[5], (hidden, E), jnp.float32) * s       # fc[0]
    b1 = jax.random.normal(ks[6], (hidden,), jnp.float32) * s
    w2 = jax.random.normal(ks[7], (1, hidden), jnp.float32) * s       # fc[2]
    b2 = jax.random.normal(ks[8], (1,), jnp.float32) * s

    wq, wk, wv = in_proj_w[:E], in_proj_w[E:2 * E], in_proj_w[2 * E:]
    bq, bk, bv = in_proj_b[:E], in_proj_b[E:2 * E], in_proj_b[2 * E:]
    return dict(
        query=query,
        wq_t=wq.T, wk_t=wk.T, wv_t=wv.T,
        bq=bq.reshape(1, E), bk=bk.reshape(1, E), bv=bv.reshape(1, E),
        wo_t=wo.T, bo=bo.reshape(1, E),
        w1_t=w1.T, b1=b1.reshape(1, hidden),
        w2_t=w2.T, b2=b2.reshape(1, 1),
    )


def reference(f1, f2, p, num_heads):
    # Pure-JAX reference mirroring torch.nn.MultiheadAttention semantics
    # (uses the *unfused* parameters, so it also validates the host fusion).
    B, E = f1.shape
    H = num_heads
    Dh = E // H
    q = p["query"] @ p["wq_t"] + p["bq"]                       # (1, E)
    feats = jnp.stack([f1, f2], axis=1)                        # (B, 2, E)
    k = feats @ p["wk_t"] + p["bk"]                            # (B, 2, E)
    v = feats @ p["wv_t"] + p["bv"]
    qh = q.reshape(1, 1, H, Dh).transpose(0, 2, 1, 3)          # (1, H, 1, Dh)
    kh = k.reshape(B, 2, H, Dh).transpose(0, 2, 1, 3)          # (B, H, 2, Dh)
    vh = v.reshape(B, 2, H, Dh).transpose(0, 2, 1, 3)
    scores = jnp.einsum("xhqd,bhkd->bhqk", qh, kh) / math.sqrt(Dh)
    w = jax.nn.softmax(scores, axis=-1)
    o = jnp.einsum("bhqk,bhkd->bhqd", w, vh)                   # (B, H, 1, Dh)
    o = o.transpose(0, 2, 1, 3).reshape(B, E)
    o = o @ p["wo_t"] + p["bo"]
    h1 = jnp.maximum(o @ p["w1_t"] + p["b1"], 0.0)
    return h1 @ p["w2_t"] + p["b2"]


if __name__ == "__main__":
    # query_dim must equal feature_dim for nn.MultiheadAttention(embed_dim=feature_dim)
    FEATURE_DIM = 32
    NUM_HEADS = 4
    HIDDEN_DIM = 32
    BATCH = 16

    key = jax.random.PRNGKey(0)
    kf1, kf2, kp = jax.random.split(key, 3)
    feature1 = jax.random.normal(kf1, (BATCH, FEATURE_DIM), jnp.float32)
    feature2 = jax.random.normal(kf2, (BATCH, FEATURE_DIM), jnp.float32)
    params = init_params(kp, FEATURE_DIM, HIDDEN_DIM)

    out = cross_attention_model(feature1, feature2, params, num_heads=NUM_HEADS)
    out = jax.block_until_ready(out)

    ref = reference(feature1, feature2, params, NUM_HEADS)
    assert out.shape == (BATCH, 1), out.shape
    assert jnp.allclose(out, ref, atol=1e-4, rtol=1e-4), \
        f"max err {jnp.max(jnp.abs(out - ref))}"
    print("KERNEL_OK")
</pallas_src>

<mosaic_0001>
module attributes {stable_mosaic.version = 11 : i64} {
  func.func @cross_attention_kernel(%arg0: i32, %arg1: memref<16x32xf32, #tpu.memory_space<vmem>>, %arg2: memref<16x32xf32, #tpu.memory_space<vmem>>, %arg3: memref<32x32xf32, #tpu.memory_space<vmem>>, %arg4: memref<32x32xf32, #tpu.memory_space<vmem>>, %arg5: memref<32x32xf32, #tpu.memory_space<vmem>>, %arg6: memref<1x32xf32, #tpu.memory_space<vmem>>, %arg7: memref<1x32xf32, #tpu.memory_space<vmem>>, %arg8: memref<1x1xf32, #tpu.memory_space<vmem>>, %arg9: memref<16x1xf32, #tpu.memory_space<vmem>>) attributes {dimension_semantics = [#tpu.dimension_semantics<parallel>], iteration_bounds = array<i64: 1>, scalar_prefetch = 0 : i64, scratch_operands = 0 : i64, tpu.core_type = #tpu.core_type<tc>, window_params = [{transform_indices = @transform_0, window_bounds = array<i64: 16, 32>}, {transform_indices = @transform_1, window_bounds = array<i64: 16, 32>}, {pipeline_mode = #tpu.pipeline_mode<synchronous>, transform_indices = @transform_2, window_bounds = array<i64: 32, 32>}, {pipeline_mode = #tpu.pipeline_mode<synchronous>, transform_indices = @transform_3, window_bounds = array<i64: 32, 32>}, {pipeline_mode = #tpu.pipeline_mode<synchronous>, transform_indices = @transform_4, window_bounds = array<i64: 32, 32>}, {pipeline_mode = #tpu.pipeline_mode<synchronous>, transform_indices = @transform_5, window_bounds = array<i64: 1, 32>}, {pipeline_mode = #tpu.pipeline_mode<synchronous>, transform_indices = @transform_6, window_bounds = array<i64: 1, 32>}, {pipeline_mode = #tpu.pipeline_mode<synchronous>, transform_indices = @transform_7, window_bounds = array<i64: 1, 1>}, {transform_indices = @transform_8, window_bounds = array<i64: 16, 1>}]} {
    %c0 = arith.constant 0 : index
    %c0_0 = arith.constant 0 : index
    %0 = vector.load %arg1[%c0, %c0_0] : memref<16x32xf32, #tpu.memory_space<vmem>>, vector<16x32xf32>
    %c0_1 = arith.constant 0 : index
    %c0_2 = arith.constant 0 : index
    %1 = vector.load %arg2[%c0_1, %c0_2] : memref<16x32xf32, #tpu.memory_space<vmem>>, vector<16x32xf32>
    %2 = arith.subf %0, %1 : vector<16x32xf32>
    %c0_3 = arith.constant 0 : index
    %c0_4 = arith.constant 0 : index
    %3 = vector.load %arg3[%c0_3, %c0_4] : memref<32x32xf32, #tpu.memory_space<vmem>>, vector<32x32xf32>
    %cst = arith.constant dense<0.000000e+00> : vector<16x32xf32>
    %4 = tpu.matmul %2, %3, %cst {dimension_numbers = #tpu.dot_dimension_numbers<[1], [0], [0], [1], [0, 0, 1, 1], [], []>} : vector<16x32xf32>, vector<32x32xf32>, vector<16x32xf32> -> vector<16x32xf32>
    %cst_5 = arith.constant 0.000000e+00 : f32
    %5 = vector.broadcast %cst_5 : f32 to vector<16x32xf32>
    %6 = arith.subf %5, %4 : vector<16x32xf32>
    %7 = math.exp %6 : vector<16x32xf32>
    %cst_6 = arith.constant 1.000000e+00 : f32
    %8 = vector.broadcast %cst_6 : f32 to vector<16x32xf32>
    %9 = arith.addf %8, %7 : vector<16x32xf32>
    %cst_7 = arith.constant 1.000000e+00 : f32
    %10 = vector.broadcast %cst_7 : f32 to vector<16x32xf32>
    %11 = arith.divf %10, %9 : vector<16x32xf32>
    %12 = tpu.concatenate %2, %1 in 0 : vector<16x32xf32>, vector<16x32xf32> -> vector<32x32xf32>
    %c0_8 = arith.constant 0 : index
    %c0_9 = arith.constant 0 : index
    %13 = vector.load %arg4[%c0_8, %c0_9] : memref<32x32xf32, #tpu.memory_space<vmem>>, vector<32x32xf32>
    %cst_10 = arith.constant dense<0.000000e+00> : vector<32x32xf32>
    %14 = tpu.matmul %12, %13, %cst_10 {dimension_numbers = #tpu.dot_dimension_numbers<[1], [0], [0], [1], [0, 0, 1, 1], [], []>} : vector<32x32xf32>, vector<32x32xf32>, vector<32x32xf32> -> vector<32x32xf32>
    %15 = vector.extract_strided_slice %14 {offsets = [0, 0], sizes = [16, 32], strides = [1, 1]} : vector<32x32xf32> to vector<16x32xf32>
    %16 = vector.extract_strided_slice %14 {offsets = [16, 0], sizes = [16, 32], strides = [1, 1]} : vector<32x32xf32> to vector<16x32xf32>
    %17 = arith.mulf %11, %15 : vector<16x32xf32>
    %18 = arith.addf %16, %17 : vector<16x32xf32>
    %c0_11 = arith.constant 0 : index
    %c0_12 = arith.constant 0 : index
    %19 = vector.load %arg5[%c0_11, %c0_12] : memref<32x32xf32, #tpu.memory_space<vmem>>, vector<32x32xf32>
    %cst_13 = arith.constant dense<0.000000e+00> : vector<16x32xf32>
    %20 = tpu.matmul %18, %19, %cst_13 {dimension_numbers = #tpu.dot_dimension_numbers<[1], [0], [0], [1], [0, 0, 1, 1], [], []>} : vector<16x32xf32>, vector<32x32xf32>, vector<16x32xf32> -> vector<16x32xf32>
    %c0_14 = arith.constant 0 : index
    %c0_15 = arith.constant 0 : index
    %21 = vector.load %arg6[%c0_14, %c0_15] : memref<1x32xf32, #tpu.memory_space<vmem>>, vector<1x32xf32>
    %22 = vector.broadcast %21 : vector<1x32xf32> to vector<16x32xf32>
    %23 = arith.addf %20, %22 : vector<16x32xf32>
    %cst_16 = arith.constant 0.000000e+00 : f32
    %24 = vector.broadcast %cst_16 : f32 to vector<16x32xf32>
    %25 = arith.maximumf %23, %24 : vector<16x32xf32>
    %c0_17 = arith.constant 0 : index
    %c0_18 = arith.constant 0 : index
    %26 = vector.load %arg7[%c0_17, %c0_18] : memref<1x32xf32, #tpu.memory_space<vmem>>, vector<1x32xf32>
    %27 = vector.broadcast %26 : vector<1x32xf32> to vector<16x32xf32>
    %28 = arith.mulf %25, %27 : vector<16x32xf32>
    %cst_19 = arith.constant dense<0.000000e+00> : vector<16xf32>
    %29 = vector.multi_reduction <add>, %28, %cst_19 [1] : vector<16x32xf32> to vector<16xf32>
    %30 = vector.shape_cast %29 : vector<16xf32> to vector<16x1xf32>
    %c0_20 = arith.constant 0 : index
    %c0_21 = arith.constant 0 : index
    %31 = vector.load %arg8[%c0_20, %c0_21] : memref<1x1xf32, #tpu.memory_space<vmem>>, vector<1x1xf32>
    %32 = vector.broadcast %31 : vector<1x1xf32> to vector<16x1xf32>
    %33 = arith.addf %30, %32 : vector<16x1xf32>
    %c0_22 = arith.constant 0 : index
    %c0_23 = arith.constant 0 : index
    %34 = vector.load %arg9[%c0_22, %c0_23] : memref<16x1xf32, #tpu.memory_space<vmem>>, vector<16x1xf32>
    tpu.vector_store %arg9[%c0_22, %c0_23], %33 {strides = array<i32>} : memref<16x1xf32, #tpu.memory_space<vmem>>, vector<16x1xf32>,
    return
  }
  func.func @transform_0(%arg0: i32) -> (i32, i32) {
    %c0_i32 = arith.constant 0 : i32
    %c0_i32_0 = arith.constant 0 : i32
    return %arg0, %c0_i32 : i32, i32
  }
  func.func @transform_1(%arg0: i32) -> (i32, i32) {
    %c0_i32 = arith.constant 0 : i32
    %c0_i32_0 = arith.constant 0 : i32
    return %arg0, %c0_i32 : i32, i32
  }
  func.func @transform_2(%arg0: i32) -> (i32, i32) {
    %c0_i32 = arith.constant 0 : i32
    %c0_i32_0 = arith.constant 0 : i32
    %c0_i32_1 = arith.constant 0 : i32
    return %c0_i32, %c0_i32_0 : i32, i32
  }
  func.func @transform_3(%arg0: i32) -> (i32, i32) {
    %c0_i32 = arith.constant 0 : i32
    %c0_i32_0 = arith.constant 0 : i32
    %c0_i32_1 = arith.constant 0 : i32
    return %c0_i32, %c0_i32_0 : i32, i32
  }
  func.func @transform_4(%arg0: i32) -> (i32, i32) {
    %c0_i32 = arith.constant 0 : i32
    %c0_i32_0 = arith.constant 0 : i32
    %c0_i32_1 = arith.constant 0 : i32
    return %c0_i32, %c0_i32_0 : i32, i32
  }
  func.func @transform_5(%arg0: i32) -> (i32, i32) {
    %c0_i32 = arith.constant 0 : i32
    %c0_i32_0 = arith.constant 0 : i32
    %c0_i32_1 = arith.constant 0 : i32
    return %c0_i32, %c0_i32_0 : i32, i32
  }
  func.func @transform_6(%arg0: i32) -> (i32, i32) {
    %c0_i32 = arith.constant 0 : i32
    %c0_i32_0 = arith.constant 0 : i32
    %c0_i32_1 = arith.constant 0 : i32
    return %c0_i32, %c0_i32_0 : i32, i32
  }
  func.func @transform_7(%arg0: i32) -> (i32, i32) {
    %c0_i32 = arith.constant 0 : i32
    %c0_i32_0 = arith.constant 0 : i32
    %c0_i32_1 = arith.constant 0 : i32
    return %c0_i32, %c0_i32_0 : i32, i32
  }
  func.func @transform_8(%arg0: i32) -> (i32, i32) {
    %c0_i32 = arith.constant 0 : i32
    %c0_i32_0 = arith.constant 0 : i32
    return %arg0, %c0_i32 : i32, i32
  }
}

</mosaic_0001>

<llo_original>
// kernel: tpu_custom_call.1
$region0: #{tpu_custom_call.1}
  #allocation0 [shape = 'u32[]', space=smem, size = 0x4, offset = 0x4, fixed_abs, tag = 'smem constant byte address 0x4 - core index']
  #allocation1 [shape = 'u32[144,128]{1,0:T(1,128)}', space=vmem, size = 0x12000, scoped, tag = 'internal scratch']
  #allocation2 [shape = 'f32[1,1]{1,0:T(1,128)S(1)}', space=vmem, size = 0x200, scoped, tag = 'scoped memory for tpu_custom_call.1']
  %s0 = inlined_call_operand.hbm [shape: f32[16,32], index: 0, kind: input, shape index: {}]
  %s1 = inlined_call_operand.hbm [shape: f32[16,32], index: 1, kind: input, shape index: {}]
  %s2 = inlined_call_operand.hbm [shape: f32[32,32], index: 2, kind: input, shape index: {}]
  %s3 = inlined_call_operand.hbm [shape: f32[32,32], index: 3, kind: input, shape index: {}]
  %s4 = inlined_call_operand.hbm [shape: f32[32,32], index: 4, kind: input, shape index: {}]
  %s5 = inlined_call_operand.vmem [shape: f32[1,32], index: 5, kind: input, shape index: {}]
  %s6 = inlined_call_operand.vmem [shape: f32[1,32], index: 6, kind: input, shape index: {}]
  %s7 = inlined_call_operand.<no memory space> [shape: f32[1,1], index: 7, kind: input, shape index: {}]
  %s8 = inlined_call_operand.vmem [shape: f32[16,1], index: 8, kind: output, shape index: {}]
  %s9 = sld [smem:[#allocation0]]
  $region62: #{tpu_custom_call.1} parent=0
    _
  %s11 = ssub.s32 1, %s9
  %s12 = scalar_select 0, %s11, %s9
  %v13 = vstv %s7
  %14 = vst [vmem:[#allocation2] sm:$0x1] %v13
  $region1: #{tpu_custom_call.1} parent=0
    #allocation3 [shape = 'u8[8192]{0}', space=vmem, size = 0x2000, scoped, tag = 'input window, operand 0, single buffered']
    #allocation4 [shape = 's32[1]{0}', space=sflag, size = 0x4, scoped, tag = 'scoped memory for tpu_custom_call.1']
    #allocation5 [shape = 'u8[8192]{0}', space=vmem, size = 0x2000, scoped, tag = 'input window, operand 1, single buffered']
    #allocation6 [shape = 's32[1]{0}', space=sflag, size = 0x4, scoped, tag = 'scoped memory for tpu_custom_call.1']
    #allocation7 [shape = 'u8[16384]{0}', space=vmem, size = 0x4000, scoped, tag = 'input window, operand 2, single buffered']
    #allocation8 [shape = 'u8[16384]{0}', space=vmem, size = 0x4000, scoped, tag = 'input window, operand 3, single buffered']
    #allocation9 [shape = 's32[1]{0}', space=sflag, size = 0x4, scoped, tag = 'scoped memory for tpu_custom_call.1']
    #allocation10 [shape = 'u8[16384]{0}', space=vmem, size = 0x4000, scoped, tag = 'input window, operand 4, single buffered']
    %15 = vsyncpa [#allocation4], 0
    %16 = vsyncpa [#allocation6], 0
    %17 = vsyncpa [#allocation9], 0
    // Predicated region
    $region2: #{tpu_custom_call.1} parent=1 // pred_check
      _
    $region3: #{tpu_custom_call.1} parent=1 // pred_check_branch
      %19 = sbr.rel (0) target = $region5
    $region4: #{tpu_custom_call.1} parent=1 // pred_region
      %s21 = ssub.s32 256, 256
      %22 = vsyncadd [#allocation4], %s21
      %s23 = sshll.u32 [#allocation3], 4
      %s24 = int_to_ptr.vmem [resolvable:$true] %s23
      %29 = dma.hbm_to_vmem [thread:$0]  %s0, 256, %s24, [#allocation4], 128, 128, 8
    $region5: #{tpu_custom_call.1} parent=1 // pred_fallthru
      _
    // Predicated region
    $region6: #{tpu_custom_call.1} parent=1 // pred_check
      _
    $region7: #{tpu_custom_call.1} parent=1 // pred_check_branch
      %31 = sbr.rel (0) target = $region9
    $region8: #{tpu_custom_call.1} parent=1 // pred_region
      %s33 = ssub.s32 256, 256
      %34 = vsyncadd [#allocation6], %s33
      %s35 = sshll.u32 [#allocation5], 4
      %s36 = int_to_ptr.vmem [resolvable:$true] %s35
      %41 = dma.hbm_to_vmem [thread:$0]  %s1, 256, %s36, [#allocation6], 128, 128, 8
    $region9: #{tpu_custom_call.1} parent=1 // pred_fallthru
      _
    // Predicated region
    $region10: #{tpu_custom_call.1} parent=1 // pred_check
      _
    $region11: #{tpu_custom_call.1} parent=1 // pred_check_branch
      %43 = sbr.rel (0) target = $region13
    $region12: #{tpu_custom_call.1} parent=1 // pred_region
      %s45 = ssub.s32 512, 512
      %46 = vsyncadd [#allocation6], %s45
      %s47 = sshll.u32 [#allocation7], 4
      %s48 = int_to_ptr.vmem [resolvable:$true] %s47
      %53 = dma.hbm_to_vmem [thread:$0]  %s2, 512, %s48, [#allocation6], 128, 128, 8
    $region13: #{tpu_custom_call.1} parent=1 // pred_fallthru
      _
    // Predicated region
    $region14: #{tpu_custom_call.1} parent=1 // pred_check
      _
    $region15: #{tpu_custom_call.1} parent=1 // pred_check_branch
      %55 = sbr.rel (0) target = $region17
    $region16: #{tpu_custom_call.1} parent=1 // pred_region
      %s57 = ssub.s32 512, 512
      %58 = vsyncadd [#allocation9], %s57
      %s59 = sshll.u32 [#allocation8], 4
      %s60 = int_to_ptr.vmem [resolvable:$true] %s59
      %65 = dma.hbm_to_vmem [thread:$0]  %s3, 512, %s60, [#allocation9], 128, 128, 8
    $region17: #{tpu_custom_call.1} parent=1 // pred_fallthru
      _
    // Predicated region
    $region18: #{tpu_custom_call.1} parent=1 // pred_check
      _
    $region19: #{tpu_custom_call.1} parent=1 // pred_check_branch
      %67 = sbr.rel (0) target = $region21
    $region20: #{tpu_custom_call.1} parent=1 // pred_region
      %s69 = ssub.s32 512, 512
      %70 = vsyncadd [#allocation9], %s69
      %s71 = sshll.u32 [#allocation10], 4
      %s72 = int_to_ptr.vmem [resolvable:$true] %s71
      %77 = dma.hbm_to_vmem [thread:$0]  %s4, 512, %s72, [#allocation9], 128, 128, 8
    $region21: #{tpu_custom_call.1} parent=1 // pred_fallthru
      _
    // Predicated region
    $region22: #{tpu_custom_call.1} parent=1 // pred_check
      _
    $region23: #{tpu_custom_call.1} parent=1 // pred_check_branch
      %79 = sbr.rel (0) target = $region25
    $region24: #{tpu_custom_call.1} parent=1 // pred_region
      _
    $region25: #{tpu_custom_call.1} parent=1 // pred_fallthru
      _
    // Predicated region
    $region26: #{tpu_custom_call.1} parent=1 // pred_check
      _
    $region27: #{tpu_custom_call.1} parent=1 // pred_check_branch
      %81 = sbr.rel (0) target = $region29
    $region28: #{tpu_custom_call.1} parent=1 // pred_region
      _
    $region29: #{tpu_custom_call.1} parent=1 // pred_fallthru
      _
    // Predicated region
    $region30: #{tpu_custom_call.1} parent=1 // pred_check
      _
    $region31: #{tpu_custom_call.1} parent=1 // pred_check_branch
      %83 = sbr.rel (0) target = $region33
    $region32: #{tpu_custom_call.1} parent=1 // pred_region
      _
    $region33: #{tpu_custom_call.1} parent=1 // pred_fallthru
      _
    // Predicated region
    $region34: #{tpu_custom_call.1} parent=1 // pred_check
      _
    $region35: #{tpu_custom_call.1} parent=1 // pred_check_branch
      %85 = sbr.rel (0) target = $region37
    $region36: #{tpu_custom_call.1} parent=1 // pred_region
      %86 = dma.done [#allocation4], 256
    $region37: #{tpu_custom_call.1} parent=1 // pred_fallthru
      _
    // Predicated region
    $region38: #{tpu_custom_call.1} parent=1 // pred_check
      _
    $region39: #{tpu_custom_call.1} parent=1 // pred_check_branch
      %88 = sbr.rel (0) target = $region41
    $region40: #{tpu_custom_call.1} parent=1 // pred_region
      %89 = dma.done [#allocation6], 256
    $region41: #{tpu_custom_call.1} parent=1 // pred_fallthru
      _
    // Predicated region
    $region42: #{tpu_custom_call.1} parent=1 // pred_check
      _
    $region43: #{tpu_custom_call.1} parent=1 // pred_check_branch
      %91 = sbr.rel (0) target = $region45
    $region44: #{tpu_custom_call.1} parent=1 // pred_region
      %92 = dma.done [#allocation6], 512
    $region45: #{tpu_custom_call.1} parent=1 // pred_fallthru
      _
    // Predicated region
    $region46: #{tpu_custom_call.1} parent=1 // pred_check
      _
    $region47: #{tpu_custom_call.1} parent=1 // pred_check_branch
      %94 = sbr.rel (0) target = $region49
    $region48: #{tpu_custom_call.1} parent=1 // pred_region
      %95 = dma.done [#allocation9], 512
    $region49: #{tpu_custom_call.1} parent=1 // pred_fallthru
      _
    // Predicated region
    $region50: #{tpu_custom_call.1} parent=1 // pred_check
      _
    $region51: #{tpu_custom_call.1} parent=1 // pred_check_branch
      %97 = sbr.rel (0) target = $region53
    $region52: #{tpu_custom_call.1} parent=1 // pred_region
      %98 = dma.done [#allocation9], 512
    $region53: #{tpu_custom_call.1} parent=1 // pred_fallthru
      _
    %v99 = vld [vmem:[#allocation3] sm:$0xff]
    %v100 = vld [vmem:[#allocation3 + $0x8] sm:$0xff]
    %v101 = vld [vmem:[#allocation5] sm:$0xff]
    %v102 = vld [vmem:[#allocation5 + $0x8] sm:$0xff]
    %v103 = vsub.f32 %v99, %v101
    %v104 = vsub.f32 %v100, %v102
    %v105 = vld [vmem:[#allocation7] sm:$0xff]
    %v106 = vld [vmem:[#allocation7 + $0x8] sm:$0xff]
    %v107 = vld [vmem:[#allocation7 + $0x10] sm:$0xff]
    %v108 = vld [vmem:[#allocation7 + $0x18] sm:$0xff]
    %vm109 = vcmask 261120
    %v111 = vsel %vm109, %v103, 0
    %v114 = vsel %vm109, %v104, 0
    %116 = vmatprep.subr.mxu0 0.0
    %117 = vmatpush1.msra.mxu0 0.0
    %118 = vmatprep.subr.mxu0 0.0
    %119 = vmatpush1.msra.mxu0 0.0
    %120 = vmatprep.subr.mxu0 0.0
    %121 = vmatpush1.msra.mxu0 0.0
    %122 = vmatprep.subr.mxu0 0.0
    %123 = vmatpush1.msra.mxu0 0.0
    %124 = vmatprep.subr.mxu0 0.0
    %125 = vmatpush1.msra.mxu0 0.0
    %126 = vmatprep.subr.mxu0 0.0
    %127 = vmatpush1.msra.mxu0 0.0
    %128 = vmatprep.subr.mxu0 0.0
    %129 = vmatpush1.msra.mxu0 0.0
    %130 = vmatprep.subr.mxu0 0.0
    %131 = vmatpush1.msra.mxu0 0.0
    %132 = vmatprep.subr.mxu0 0.0
    %133 = vmatpush1.msra.mxu0 0.0
    %134 = vmatprep.subr.mxu0 0.0
    %135 = vmatpush1.msra.mxu0 0.0
    %136 = vmatprep.subr.mxu0 0.0
    %137 = vmatpush1.msra.mxu0 0.0
    %138 = vmatprep.subr.mxu0 0.0
    %139 = vmatpush1.msra.mxu0 0.0
    %140 = vmatprep.subr.mxu0 0.0
    %141 = vmatpush1.msra.mxu0 %v108
    %142 = vmatprep.subr.mxu0 0.0
    %143 = vmatpush1.msra.mxu0 %v107
    %144 = vmatprep.subr.mxu0 0.0
    %145 = vmatpush1.msra.mxu0 %v106
    %146 = vmatprep.subr.mxu0 0.0
    %147 = vmatpush1.msra.mxu0 %v105
    %148 = vmatprep.subr.mxu0 0.0
    %149 = vmatpush2.msra.mxu0 0.0
    %150 = vmatprep.subr.mxu0 0.0
    %151 = vmatpush2.msra.mxu0 0.0
    %152 = vmatprep.subr.mxu0 0.0
    %153 = vmatpush2.msra.mxu0 0.0
    %154 = vmatprep.subr.mxu0 0.0
    %155 = vmatpush2.msra.mxu0 0.0
    %156 = vmatprep.subr.mxu0 0.0
    %157 = vmatpush2.msra.mxu0 0.0
    %158 = vmatprep.subr.mxu0 0.0
    %159 = vmatpush2.msra.mxu0 0.0
    %160 = vmatprep.subr.mxu0 0.0
    %161 = vmatpush2.msra.mxu0 0.0
    %162 = vmatprep.subr.mxu0 0.0
    %163 = vmatpush2.msra.mxu0 0.0
    %164 = vmatprep.subr.mxu0 0.0
    %165 = vmatpush2.msra.mxu0 0.0
    %166 = vmatprep.subr.mxu0 0.0
    %167 = vmatpush2.msra.mxu0 0.0
    %168 = vmatprep.subr.mxu0 0.0
    %169 = vmatpush2.msra.mxu0 0.0
    %170 = vmatprep.subr.mxu0 0.0
    %171 = vmatpush2.msra.mxu0 0.0
    %172 = vmatprep.subr.mxu0 0.0
    %173 = vmatpush2.msra.mxu0 0.0
    %174 = vmatprep.subr.mxu0 0.0
    %175 = vmatpush2.msra.mxu0 0.0
    %176 = vmatprep.subr.mxu0 0.0
    %177 = vmatpush2.msra.mxu0 0.0
    %178 = vmatprep.subr.mxu0 0.0
    %179 = vmatpush2.msra.mxu0 0.0
    %180 = vmatprep.mubr.f32.mxu0 0.0
    %181 = vmatmul.mubr.f32.gmra.mxu0 %v111
    %v182 = vpop.f32.mrf.mxu0
    %v183 = vadd.f32 0.0, %v182
    %v184 = vpop.f32.mrf.mxu0
    %185 = vmatprep.mubr.f32.mxu0 0.0
    %186 = vmatmul.mubr.f32.gmra.mxu0 %v114
    %v187 = vpop.f32.mrf.mxu0
    %v188 = vadd.f32 0.0, %v187
    %v189 = vpop.f32.mrf.mxu0
    %190 = vdwg.mxu0
    %v191 = vsub.f32 0.0, %v183
    %v192 = vsub.f32 0.0, %v188
    %v193 = vmul.f32 %v191, 1.442695
    %v194 = vpow.pop %v193
    %v195 = vmul.f32 %v192, 1.442695
    %v196 = vpow.pop %v195
    %v197 = vadd.f32 %v194, 1.0
    %v198 = vadd.f32 %v196, 1.0
    %v199 = vrcp.pop %v197
    %v200 = vmul.f32 1.0, %v199
    %v201 = vrcp.pop %v198
    %v202 = vmul.f32 1.0, %v201
    %v203 = vld [vmem:[#allocation8] sm:$0xff]
    %v204 = vld [vmem:[#allocation8 + $0x8] sm:$0xff]
    %v205 = vld [vmem:[#allocation8 + $0x10] sm:$0xff]
    %v206 = vld [vmem:[#allocation8 + $0x18] sm:$0xff]
    %v208 = vsel %vm109, %v101, 0
    %v211 = vsel %vm109, %v102, 0
    %213 = vmatprep.subr.mxu0 0.0
    %214 = vmatpush1.msra.mxu0 0.0
    %215 = vmatprep.subr.mxu0 0.0
    %216 = vmatpush1.msra.mxu0 0.0
    %217 = vmatprep.subr.mxu0 0.0
    %218 = vmatpush1.msra.mxu0 0.0
    %219 = vmatprep.subr.mxu0 0.0
    %220 = vmatpush1.msra.mxu0 0.0
    %221 = vmatprep.subr.mxu0 0.0
    %222 = vmatpush1.msra.mxu0 0.0
    %223 = vmatprep.subr.mxu0 0.0
    %224 = vmatpush1.msra.mxu0 0.0
    %225 = vmatprep.subr.mxu0 0.0
    %226 = vmatpush1.msra.mxu0 0.0
    %227 = vmatprep.subr.mxu0 0.0
    %228 = vmatpush1.msra.mxu0 0.0
    %229 = vmatprep.subr.mxu0 0.0
    %230 = vmatpush1.msra.mxu0 0.0
    %231 = vmatprep.subr.mxu0 0.0
    %232 = vmatpush1.msra.mxu0 0.0
    %233 = vmatprep.subr.mxu0 0.0
    %234 = vmatpush1.msra.mxu0 0.0
    %235 = vmatprep.subr.mxu0 0.0
    %236 = vmatpush1.msra.mxu0 0.0
    %237 = vmatprep.subr.mxu0 0.0
    %238 = vmatpush1.msra.mxu0 %v206
    %239 = vmatprep.subr.mxu0 0.0
    %240 = vmatpush1.msra.mxu0 %v205
    %241 = vmatprep.subr.mxu0 0.0
    %242 = vmatpush1.msra.mxu0 %v204
    %243 = vmatprep.subr.mxu0 0.0
    %244 = vmatpush1.msra.mxu0 %v203
    %245 = vmatprep.subr.mxu0 0.0
    %246 = vmatpush2.msra.mxu0 0.0
    %247 = vmatprep.subr.mxu0 0.0
    %248 = vmatpush2.msra.mxu0 0.0
    %249 = vmatprep.subr.mxu0 0.0
    %250 = vmatpush2.msra.mxu0 0.0
    %251 = vmatprep.subr.mxu0 0.0
    %252 = vmatpush2.msra.mxu0 0.0
    %253 = vmatprep.subr.mxu0 0.0
    %254 = vmatpush2.msra.mxu0 0.0
    %255 = vmatprep.subr.mxu0 0.0
    %256 = vmatpush2.msra.mxu0 0.0
    %257 = vmatprep.subr.mxu0 0.0
    %258 = vmatpush2.msra.mxu0 0.0
    %259 = vmatprep.subr.mxu0 0.0
    %260 = vmatpush2.msra.mxu0 0.0
    %261 = vmatprep.subr.mxu0 0.0
    %262 = vmatpush2.msra.mxu0 0.0
    %263 = vmatprep.subr.mxu0 0.0
    %264 = vmatpush2.msra.mxu0 0.0
    %265 = vmatprep.subr.mxu0 0.0
    %266 = vmatpush2.msra.mxu0 0.0
    %267 = vmatprep.subr.mxu0 0.0
    %268 = vmatpush2.msra.mxu0 0.0
    %269 = vmatprep.subr.mxu0 0.0
    %270 = vmatpush2.msra.mxu0 0.0
    %271 = vmatprep.subr.mxu0 0.0
    %272 = vmatpush2.msra.mxu0 0.0
    %273 = vmatprep.subr.mxu0 0.0
    %274 = vmatpush2.msra.mxu0 0.0
    %275 = vmatprep.subr.mxu0 0.0
    %276 = vmatpush2.msra.mxu0 0.0
    %277 = vmatprep.mubr.f32.mxu0 0.0
    %278 = vmatmul.mubr.f32.gmra.mxu0 %v111
    %v279 = vpop.f32.mrf.mxu0
    %v280 = vadd.f32 0.0, %v279
    %v281 = vpop.f32.mrf.mxu0
    %282 = vmatprep.mubr.f32.mxu0 0.0
    %283 = vmatmul.mubr.f32.gmra.mxu0 %v114
    %v284 = vpop.f32.mrf.mxu0
    %v285 = vadd.f32 0.0, %v284
    %v286 = vpop.f32.mrf.mxu0
    %287 = vmatprep.mubr.f32.mxu0 0.0
    %288 = vmatmul.mubr.f32.gmra.mxu0 %v208
    %v289 = vpop.f32.mrf.mxu0
    %v290 = vadd.f32 0.0, %v289
    %v291 = vpop.f32.mrf.mxu0
    %292 = vmatprep.mubr.f32.mxu0 0.0
    %293 = vmatmul.mubr.f32.gmra.mxu0 %v211
    %v294 = vpop.f32.mrf.mxu0
    %v295 = vadd.f32 0.0, %v294
    %v296 = vpop.f32.mrf.mxu0
    %297 = vdwg.mxu0
    %v298 = vmul.f32 %v200, %v280
    %v299 = vmul.f32 %v202, %v285
    %v300 = vadd.f32 %v290, %v298
    %v301 = vadd.f32 %v295, %v299
    %v302 = vld [vmem:[#allocation10] sm:$0xff]
    %v303 = vld [vmem:[#allocation10 + $0x8] sm:$0xff]
    %v304 = vld [vmem:[#allocation10 + $0x10] sm:$0xff]
    %v305 = vld [vmem:[#allocation10 + $0x18] sm:$0xff]
    %v306 = vld [vmem:[%s5] sm:$0x1]
    %v308 = vlaneseq
    %v309 = vshrl.u32 %v308, 7
    %v310 = vsub.s32 0, %v309
    %v311 = vrot.slane %v306, %v310
    %v314 = vsel %vm109, %v300, 0
    %v317 = vsel %vm109, %v301, 0
    %319 = vmatprep.subr.mxu0 0.0
    %320 = vmatpush1.msra.mxu0 0.0
    %321 = vmatprep.subr.mxu0 0.0
    %322 = vmatpush1.msra.mxu0 0.0
    %323 = vmatprep.subr.mxu0 0.0
    %324 = vmatpush1.msra.mxu0 0.0
    %325 = vmatprep.subr.mxu0 0.0
    %326 = vmatpush1.msra.mxu0 0.0
    %327 = vmatprep.subr.mxu0 0.0
    %328 = vmatpush1.msra.mxu0 0.0
    %329 = vmatprep.subr.mxu0 0.0
    %330 = vmatpush1.msra.mxu0 0.0
    %331 = vmatprep.subr.mxu0 0.0
    %332 = vmatpush1.msra.mxu0 0.0
    %333 = vmatprep.subr.mxu0 0.0
    %334 = vmatpush1.msra.mxu0 0.0
    %335 = vmatprep.subr.mxu0 0.0
    %336 = vmatpush1.msra.mxu0 0.0
    %337 = vmatprep.subr.mxu0 0.0
    %338 = vmatpush1.msra.mxu0 0.0
    %339 = vmatprep.subr.mxu0 0.0
    %340 = vmatpush1.msra.mxu0 0.0
    %341 = vmatprep.subr.mxu0 0.0
    %342 = vmatpush1.msra.mxu0 0.0
    %343 = vmatprep.subr.mxu0 0.0
    %344 = vmatpush1.msra.mxu0 %v305
    %345 = vmatprep.subr.mxu0 0.0
    %346 = vmatpush1.msra.mxu0 %v304
    %347 = vmatprep.subr.mxu0 0.0
    %348 = vmatpush1.msra.mxu0 %v303
    %349 = vmatprep.subr.mxu0 0.0
    %350 = vmatpush1.msra.mxu0 %v302
    %351 = vmatprep.subr.mxu0 0.0
    %352 = vmatpush2.msra.mxu0 0.0
    %353 = vmatprep.subr.mxu0 0.0
    %354 = vmatpush2.msra.mxu0 0.0
    %355 = vmatprep.subr.mxu0 0.0
    %356 = vmatpush2.msra.mxu0 0.0
    %357 = vmatprep.subr.mxu0 0.0
    %358 = vmatpush2.msra.mxu0 0.0
    %359 = vmatprep.subr.mxu0 0.0
    %360 = vmatpush2.msra.mxu0 0.0
    %361 = vmatprep.subr.mxu0 0.0
    %362 = vmatpush2.msra.mxu0 0.0
    %363 = vmatprep.subr.mxu0 0.0
    %364 = vmatpush2.msra.mxu0 0.0
    %365 = vmatprep.subr.mxu0 0.0
    %366 = vmatpush2.msra.mxu0 0.0
    %367 = vmatprep.subr.mxu0 0.0
    %368 = vmatpush2.msra.mxu0 0.0
    %369 = vmatprep.subr.mxu0 0.0
    %370 = vmatpush2.msra.mxu0 0.0
    %371 = vmatprep.subr.mxu0 0.0
    %372 = vmatpush2.msra.mxu0 0.0
    %373 = vmatprep.subr.mxu0 0.0
    %374 = vmatpush2.msra.mxu0 0.0
    %375 = vmatprep.subr.mxu0 0.0
    %376 = vmatpush2.msra.mxu0 0.0
    %377 = vmatprep.subr.mxu0 0.0
    %378 = vmatpush2.msra.mxu0 0.0
    %379 = vmatprep.subr.mxu0 0.0
    %380 = vmatpush2.msra.mxu0 0.0
    %381 = vmatprep.subr.mxu0 0.0
    %382 = vmatpush2.msra.mxu0 0.0
    %383 = vmatprep.mubr.f32.mxu0 0.0
    %384 = vmatmul.mubr.f32.gmra.mxu0 %v314
    %v385 = vpop.f32.mrf.mxu0
    %v386 = vadd.f32 %v311, %v385
    %v387 = vpop.f32.mrf.mxu0
    %388 = vmatprep.mubr.f32.mxu0 0.0
    %389 = vmatmul.mubr.f32.gmra.mxu0 %v317
    %v390 = vpop.f32.mrf.mxu0
    %v391 = vadd.f32 %v311, %v390
    %v392 = vpop.f32.mrf.mxu0
    %393 = vdwg.mxu0
    %v394 = vmax.f32 %v386, 0.0
    %v395 = vmax.f32 %v391, 0.0
    %v396 = vld [vmem:[%s6] sm:$0x1]
    %v398 = vlaneseq
    %v399 = vshrl.u32 %v398, 7
    %v400 = vsub.s32 0, %v399
    %v401 = vrot.slane %v396, %v400
    %v403 = vmul.f32 %v394, %v401
    %v404 = vmul.f32 %v395, %v401
    %v405 = vsel %vm109, %v403, 0.0
    %406 = vadd.xlane.f32.xlu0 %v405
    %v407 = vpop.xlane.xlu0 %406
    %v408 = vsel %vm109, %v404, 0.0
    %409 = vadd.xlane.f32.xlu0 %v408
    %v410 = vpop.xlane.xlu0 %409
    %v411 = vld [vmem:[#allocation2] sm:$0x1]
    %v413 = vlaneseq
    %v414 = vshrl.u32 %v413, 7
    %v415 = vsub.s32 0, %v414
    %v416 = vrot.slane %v411, %v415
    %v418 = vadd.f32 %v407, %v416
    %v419 = vadd.f32 %v410, %v416
    %vm420 = vcmask 7168
    %421 = vst.msk [vmem:[%s8] sm:$0xff] %vm420, %v418
    %422 = vst.msk [vmem:[%s8 + $0x8] sm:$0xff] %vm420, %v419
    // Predicated region
    $region54: #{tpu_custom_call.1} parent=1 // pred_check
      _
    $region55: #{tpu_custom_call.1} parent=1 // pred_check_branch
      %424 = sbr.rel (0) target = $region57
    $region56: #{tpu_custom_call.1} parent=1 // pred_region
      _
    $region57: #{tpu_custom_call.1} parent=1 // pred_fallthru
      _
    // Predicated region
    $region58: #{tpu_custom_call.1} parent=1 // pred_check
      _
    $region59: #{tpu_custom_call.1} parent=1 // pred_check_branch
      %426 = sbr.rel (0) target = $region61
    $region60: #{tpu_custom_call.1} parent=1 // pred_region
      _
    $region61: #{tpu_custom_call.1} parent=1 // pred_fallthru
      _
    %427 = vsyncpa [#allocation4], 1
    %428 = vsyncpa [#allocation6], 1
    %429 = vsyncpa [#allocation9], 1

</llo_original>
